<compile_context>
chip_gen: v7x
topology: tpu7x:2x2x1
jax: 0.10.0
libtpu: 0.0.40
codegen_flags: <defaults>
</compile_context>

<pallas_src>
import math
import jax
import jax.numpy as jnp
import numpy as np
from jax.experimental import pallas as pl
from jax.experimental.pallas import tpu as pltpu


def _resblock_kernel(x_ref, w0_ref, b0_ref, w1_ref, b1_ref, o_ref):
    # x_ref : (TB, P)  flattened (channel*feature) activations, lane-dense P
    # w*_ref: (P, P)   block-diagonal weights, (in_features, out_features)
    # b*_ref: (1, P)   flattened biases (f32)
    x = x_ref[...].astype(jnp.float32)
    w0 = w0_ref[...]
    w1 = w1_ref[...]
    b0 = b0_ref[...].astype(jnp.float32)
    b1 = b1_ref[...].astype(jnp.float32)

    h = jnp.maximum(x, 0.0)                                         # relu (VPU, f32)
    h = jnp.dot(h.astype(w0.dtype), w0,
                preferred_element_type=jnp.float32) + b0            # linear 0 (MXU)
    h = jnp.maximum(h, 0.0)                                         # relu
    # dropout(p=0.0) is the identity
    h = jnp.dot(h.astype(w1.dtype), w1,
                preferred_element_type=jnp.float32) + b1            # linear 1 (MXU)
    o_ref[...] = (x + h).astype(o_ref.dtype)                        # residual add


def _round_up(n, m):
    return ((n + m - 1) // m) * m


def _block_diag(w):
    """(C, F_out, F_in) torch-layout weights -> (C*F, C*F) block-diag, (in, out)."""
    C, Fo, Fi = w.shape
    wt = jnp.transpose(w, (0, 2, 1))                    # (C, F_in, F_out)
    eye = jnp.eye(C, dtype=w.dtype)
    bd = wt[:, :, None, :] * eye[:, None, :, None]      # (C, F_in, C, F_out)
    return bd.reshape(C * Fi, C * Fo)


def residual_block_with_channel(x, w0, b0, w1, b1, *,
                                matmul_dtype=jnp.float32,
                                batch_tile_cap=256):
    """x: (B, C, F); w{0,1}: (C, F_out, F_in) (PyTorch layout); b{0,1}: (C, F)."""
    B, C, F = x.shape
    P = C * F
    P_pad = _round_up(P, 128)                 # lane-dense last dim
    TB = min(_round_up(B, 8), batch_tile_cap)  # sublane-dense batch tile
    B_pad = _round_up(B, TB)

    # --- parameter prep (done once per model in practice) -------------------
    w0_bd = _block_diag(w0).astype(matmul_dtype)
    w1_bd = _block_diag(w1).astype(matmul_dtype)
    b0_f = b0.reshape(1, P).astype(jnp.float32)
    b1_f = b1.reshape(1, P).astype(jnp.float32)
    if P_pad != P:
        w0_bd = jnp.pad(w0_bd, ((0, P_pad - P), (0, P_pad - P)))
        w1_bd = jnp.pad(w1_bd, ((0, P_pad - P), (0, P_pad - P)))
        b0_f = jnp.pad(b0_f, ((0, 0), (0, P_pad - P)))
        b1_f = jnp.pad(b1_f, ((0, 0), (0, P_pad - P)))

    # --- activations: contiguous reshape (no transpose / HBM round trip) ----
    x_flat = x.reshape(B, P)
    if (B_pad != B) or (P_pad != P):
        x_flat = jnp.pad(x_flat, ((0, B_pad - B), (0, P_pad - P)))

    grid = (B_pad // TB,)
    out_flat = pl.pallas_call(
        _resblock_kernel,
        out_shape=jax.ShapeDtypeStruct((B_pad, P_pad), x.dtype),
        grid=grid,
        in_specs=[
            pl.BlockSpec((TB, P_pad), lambda i: (i, 0)),        # x tile
            pl.BlockSpec((P_pad, P_pad), lambda i: (0, 0)),     # W0 (VMEM-resident)
            pl.BlockSpec((1, P_pad), lambda i: (0, 0)),         # b0 (VMEM-resident)
            pl.BlockSpec((P_pad, P_pad), lambda i: (0, 0)),     # W1 (VMEM-resident)
            pl.BlockSpec((1, P_pad), lambda i: (0, 0)),         # b1 (VMEM-resident)
        ],
        out_specs=pl.BlockSpec((TB, P_pad), lambda i: (i, 0)),
        compiler_params=pltpu.CompilerParams(
            dimension_semantics=("parallel",)),
    )(x_flat, w0_bd, b0_f, w1_bd, b1_f)

    return out_flat[:B, :P].reshape(B, C, F)


def _reference(x, w0, b0, w1, b1):
    """Pure-JAX reference mirroring the PyTorch forward."""
    h = jax.nn.relu(x)
    h = jnp.einsum("coi,bci->bco", w0, h) + b0[None, :, :]
    h = jax.nn.relu(h)
    h = jnp.einsum("coi,bci->bco", w1, h) + b1[None, :, :]
    return x + h


if __name__ == "__main__":
    # (batch, channels, features) -- B=8 fills the 8 sublanes, C*F = 128 lanes.
    B, C, F = 8, 4, 32
    key = jax.random.PRNGKey(0)
    kx, kw0, kb0, kw1, kb1 = jax.random.split(key, 5)

    x = jax.random.normal(kx, (B, C, F), dtype=jnp.float32)

    # Deterministic parameter init mimicking LinearWithChannel's __init__:
    #   layer 0: kaiming-uniform-style weights, uniform(-1/sqrt(fan_in), ..) bias
    #   layer 1: zero_initialization=True -> uniform(-1e-3, 1e-3) weights & bias
    bound_w = math.sqrt(6.0 / F) / math.sqrt(1.0 + 3.0)   # kaiming_uniform a=sqrt(3)
    bound_b = 1.0 / math.sqrt(F)
    w0 = jax.random.uniform(kw0, (C, F, F), jnp.float32, -bound_w, bound_w)
    b0 = jax.random.uniform(kb0, (C, F), jnp.float32, -bound_b, bound_b)
    w1 = jax.random.uniform(kw1, (C, F, F), jnp.float32, -1e-3, 1e-3)
    b1 = jax.random.uniform(kb1, (C, F), jnp.float32, -1e-3, 1e-3)

    ref = _reference(x, w0, b0, w1, b1)

    # f32 matmul operands: numerically faithful to the PyTorch module.
    out = residual_block_with_channel(x, w0, b0, w1, b1)
    out = jax.block_until_ready(out)
    np.testing.assert_allclose(np.asarray(out), np.asarray(ref),
                               rtol=1e-5, atol=1e-5)

    # bf16 matmul operands / f32 accumulate+residual: the v5e/v6e/v7x
    # throughput configuration, checked at bf16-appropriate tolerance.
    out_bf16 = residual_block_with_channel(x, w0, b0, w1, b1,
                                           matmul_dtype=jnp.bfloat16)
    out_bf16 = jax.block_until_ready(out_bf16)
    np.testing.assert_allclose(np.asarray(out_bf16), np.asarray(ref),
                               rtol=2e-2, atol=2e-2)

    print("KERNEL_OK")
</pallas_src>

<mosaic_0001>
module attributes {stable_mosaic.version = 11 : i64} {
  func.func @_resblock_kernel(%arg0: i32, %arg1: memref<8x128xf32, #tpu.memory_space<vmem>>, %arg2: memref<128x128xf32, #tpu.memory_space<vmem>>, %arg3: memref<1x128xf32, #tpu.memory_space<vmem>>, %arg4: memref<128x128xf32, #tpu.memory_space<vmem>>, %arg5: memref<1x128xf32, #tpu.memory_space<vmem>>, %arg6: memref<8x128xf32, #tpu.memory_space<vmem>>) attributes {dimension_semantics = [#tpu.dimension_semantics<parallel>], iteration_bounds = array<i64: 1>, scalar_prefetch = 0 : i64, scratch_operands = 0 : i64, tpu.core_type = #tpu.core_type<tc>, window_params = [{transform_indices = @transform_0, window_bounds = array<i64: 8, 128>}, {pipeline_mode = #tpu.pipeline_mode<synchronous>, transform_indices = @transform_1, window_bounds = array<i64: 128, 128>}, {pipeline_mode = #tpu.pipeline_mode<synchronous>, transform_indices = @transform_2, window_bounds = array<i64: 1, 128>}, {pipeline_mode = #tpu.pipeline_mode<synchronous>, transform_indices = @transform_3, window_bounds = array<i64: 128, 128>}, {pipeline_mode = #tpu.pipeline_mode<synchronous>, transform_indices = @transform_4, window_bounds = array<i64: 1, 128>}, {transform_indices = @transform_5, window_bounds = array<i64: 8, 128>}]} {
    %c0 = arith.constant 0 : index
    %c0_0 = arith.constant 0 : index
    %0 = vector.load %arg1[%c0, %c0_0] : memref<8x128xf32, #tpu.memory_space<vmem>>, vector<8x128xf32>
    %c0_1 = arith.constant 0 : index
    %c0_2 = arith.constant 0 : index
    %1 = vector.load %arg2[%c0_1, %c0_2] : memref<128x128xf32, #tpu.memory_space<vmem>>, vector<128x128xf32>
    %c0_3 = arith.constant 0 : index
    %c0_4 = arith.constant 0 : index
    %2 = vector.load %arg4[%c0_3, %c0_4] : memref<128x128xf32, #tpu.memory_space<vmem>>, vector<128x128xf32>
    %c0_5 = arith.constant 0 : index
    %c0_6 = arith.constant 0 : index
    %3 = vector.load %arg3[%c0_5, %c0_6] : memref<1x128xf32, #tpu.memory_space<vmem>>, vector<1x128xf32>
    %c0_7 = arith.constant 0 : index
    %c0_8 = arith.constant 0 : index
    %4 = vector.load %arg5[%c0_7, %c0_8] : memref<1x128xf32, #tpu.memory_space<vmem>>, vector<1x128xf32>
    %cst = arith.constant 0.000000e+00 : f32
    %5 = vector.broadcast %cst : f32 to vector<8x128xf32>
    %6 = arith.maximumf %0, %5 : vector<8x128xf32>
    %cst_9 = arith.constant dense<0.000000e+00> : vector<8x128xf32>
    %7 = tpu.matmul %6, %1, %cst_9 {dimension_numbers = #tpu.dot_dimension_numbers<[1], [0], [0], [1], [0, 0, 1, 1], [], []>} : vector<8x128xf32>, vector<128x128xf32>, vector<8x128xf32> -> vector<8x128xf32>
    %8 = vector.broadcast %3 : vector<1x128xf32> to vector<8x128xf32>
    %9 = arith.addf %7, %8 : vector<8x128xf32>
    %cst_10 = arith.constant 0.000000e+00 : f32
    %10 = vector.broadcast %cst_10 : f32 to vector<8x128xf32>
    %11 = arith.maximumf %9, %10 : vector<8x128xf32>
    %cst_11 = arith.constant dense<0.000000e+00> : vector<8x128xf32>
    %12 = tpu.matmul %11, %2, %cst_11 {dimension_numbers = #tpu.dot_dimension_numbers<[1], [0], [0], [1], [0, 0, 1, 1], [], []>} : vector<8x128xf32>, vector<128x128xf32>, vector<8x128xf32> -> vector<8x128xf32>
    %13 = vector.broadcast %4 : vector<1x128xf32> to vector<8x128xf32>
    %14 = arith.addf %12, %13 : vector<8x128xf32>
    %15 = arith.addf %0, %14 : vector<8x128xf32>
    %c0_12 = arith.constant 0 : index
    %c0_13 = arith.constant 0 : index
    %16 = vector.load %arg6[%c0_12, %c0_13] : memref<8x128xf32, #tpu.memory_space<vmem>>, vector<8x128xf32>
    tpu.vector_store %arg6[%c0_12, %c0_13], %15 {strides = array<i32>} : memref<8x128xf32, #tpu.memory_space<vmem>>, vector<8x128xf32>,
    return
  }
  func.func @transform_0(%arg0: i32) -> (i32, i32) {
    %c0_i32 = arith.constant 0 : i32
    %c0_i32_0 = arith.constant 0 : i32
    return %arg0, %c0_i32 : i32, i32
  }
  func.func @transform_1(%arg0: i32) -> (i32, i32) {
    %c0_i32 = arith.constant 0 : i32
    %c0_i32_0 = arith.constant 0 : i32
    %c0_i32_1 = arith.constant 0 : i32
    return %c0_i32, %c0_i32_0 : i32, i32
  }
  func.func @transform_2(%arg0: i32) -> (i32, i32) {
    %c0_i32 = arith.constant 0 : i32
    %c0_i32_0 = arith.constant 0 : i32
    %c0_i32_1 = arith.constant 0 : i32
    return %c0_i32, %c0_i32_0 : i32, i32
  }
  func.func @transform_3(%arg0: i32) -> (i32, i32) {
    %c0_i32 = arith.constant 0 : i32
    %c0_i32_0 = arith.constant 0 : i32
    %c0_i32_1 = arith.constant 0 : i32
    return %c0_i32, %c0_i32_0 : i32, i32
  }
  func.func @transform_4(%arg0: i32) -> (i32, i32) {
    %c0_i32 = arith.constant 0 : i32
    %c0_i32_0 = arith.constant 0 : i32
    %c0_i32_1 = arith.constant 0 : i32
    return %c0_i32, %c0_i32_0 : i32, i32
  }
  func.func @transform_5(%arg0: i32) -> (i32, i32) {
    %c0_i32 = arith.constant 0 : i32
    %c0_i32_0 = arith.constant 0 : i32
    return %arg0, %c0_i32 : i32, i32
  }
}

</mosaic_0001>

<llo_original>
// kernel: tpu_custom_call.1
$region0: #{tpu_custom_call.1}
  #allocation0 [shape = 'u32[]', space=smem, size = 0x4, offset = 0x4, fixed_abs, tag = 'smem constant byte address 0x4 - core index']
  #allocation1 [shape = 'u32[144,128]{1,0:T(1,128)}', space=vmem, size = 0x12000, scoped, tag = 'internal scratch']
  %s0 = inlined_call_operand.hbm [shape: f32[8,128], index: 0, kind: input, shape index: {}]
  %s1 = inlined_call_operand.hbm [shape: f32[128,128], index: 1, kind: input, shape index: {}]
  %s2 = inlined_call_operand.vmem [shape: f32[1,128], index: 2, kind: input, shape index: {}]
  %s3 = inlined_call_operand.hbm [shape: f32[128,128], index: 3, kind: input, shape index: {}]
  %s4 = inlined_call_operand.vmem [shape: f32[1,128], index: 4, kind: input, shape index: {}]
  %s5 = inlined_call_operand.hbm [shape: f32[8,128], index: 5, kind: output, shape index: {}]
  %s6 = sld [smem:[#allocation0]]
  $region42: #{tpu_custom_call.1} parent=0
    _
  %s8 = ssub.s32 1, %s6
  %s9 = scalar_select 0, %s8, %s6
  $region1: #{tpu_custom_call.1} parent=0
    #allocation2 [shape = 'u8[4096]{0}', space=vmem, size = 0x1000, scoped, tag = 'input window, operand 0, single buffered']
    #allocation3 [shape = 's32[1]{0}', space=sflag, size = 0x4, scoped, tag = 'scoped memory for tpu_custom_call.1']
    #allocation4 [shape = 's32[1]{0}', space=sflag, size = 0x4, scoped, tag = 'scoped memory for tpu_custom_call.1']
    #allocation5 [shape = 'u8[65536]{0}', space=vmem, size = 0x10000, scoped, tag = 'input window, operand 1, single buffered']
    #allocation6 [shape = 's32[1]{0}', space=sflag, size = 0x4, scoped, tag = 'scoped memory for tpu_custom_call.1']
    #allocation7 [shape = 'u8[65536]{0}', space=vmem, size = 0x10000, scoped, tag = 'input window, operand 3, single buffered']
    #allocation8 [shape = 'u8[4096]{0}', space=vmem, size = 0x1000, scoped, tag = 'output window, operand 0, single buffered']
    %10 = vsyncpa [#allocation3], 0
    %11 = vsyncpa [#allocation6], 0
    %12 = vsyncpa [#allocation4], 0
    // Predicated region
    $region2: #{tpu_custom_call.1} parent=1 // pred_check
      _
    $region3: #{tpu_custom_call.1} parent=1 // pred_check_branch
      %14 = sbr.rel (0) target = $region5
    $region4: #{tpu_custom_call.1} parent=1 // pred_region
      %s16 = ssub.s32 128, 128
      %17 = vsyncadd [#allocation3], %s16
      %s19 = sshll.u32 [#allocation2], 4
      %s20 = int_to_ptr.vmem [resolvable:$true] %s19
      %22 = dma.hbm_to_vmem [thread:$0]  %s0, 128, %s20, [#allocation3]
    $region5: #{tpu_custom_call.1} parent=1 // pred_fallthru
      _
    // Predicated region
    $region6: #{tpu_custom_call.1} parent=1 // pred_check
      _
    $region7: #{tpu_custom_call.1} parent=1 // pred_check_branch
      %24 = sbr.rel (0) target = $region9
    $region8: #{tpu_custom_call.1} parent=1 // pred_region
      %s26 = ssub.s32 2048, 2048
      %27 = vsyncadd [#allocation6], %s26
      %s28 = sshll.u32 [#allocation5], 4
      %s29 = int_to_ptr.vmem [resolvable:$true] %s28
      %34 = dma.hbm_to_vmem [thread:$0]  %s1, 2048, %s29, [#allocation6], 128, 128, 8
    $region9: #{tpu_custom_call.1} parent=1 // pred_fallthru
      _
    // Predicated region
    $region10: #{tpu_custom_call.1} parent=1 // pred_check
      _
    $region11: #{tpu_custom_call.1} parent=1 // pred_check_branch
      %36 = sbr.rel (0) target = $region13
    $region12: #{tpu_custom_call.1} parent=1 // pred_region
      _
    $region13: #{tpu_custom_call.1} parent=1 // pred_fallthru
      _
    // Predicated region
    $region14: #{tpu_custom_call.1} parent=1 // pred_check
      _
    $region15: #{tpu_custom_call.1} parent=1 // pred_check_branch
      %38 = sbr.rel (0) target = $region17
    $region16: #{tpu_custom_call.1} parent=1 // pred_region
      %s40 = ssub.s32 2048, 2048
      %41 = vsyncadd [#allocation6], %s40
      %s42 = sshll.u32 [#allocation7], 4
      %s43 = int_to_ptr.vmem [resolvable:$true] %s42
      %48 = dma.hbm_to_vmem [thread:$0]  %s3, 2048, %s43, [#allocation6], 128, 128, 8
    $region17: #{tpu_custom_call.1} parent=1 // pred_fallthru
      _
    // Predicated region
    $region18: #{tpu_custom_call.1} parent=1 // pred_check
      _
    $region19: #{tpu_custom_call.1} parent=1 // pred_check_branch
      %50 = sbr.rel (0) target = $region21
    $region20: #{tpu_custom_call.1} parent=1 // pred_region
      _
    $region21: #{tpu_custom_call.1} parent=1 // pred_fallthru
      _
    // Predicated region
    $region22: #{tpu_custom_call.1} parent=1 // pred_check
      _
    $region23: #{tpu_custom_call.1} parent=1 // pred_check_branch
      %52 = sbr.rel (0) target = $region25
    $region24: #{tpu_custom_call.1} parent=1 // pred_region
      %53 = dma.done [#allocation3], 128
    $region25: #{tpu_custom_call.1} parent=1 // pred_fallthru
      _
    // Predicated region
    $region26: #{tpu_custom_call.1} parent=1 // pred_check
      _
    $region27: #{tpu_custom_call.1} parent=1 // pred_check_branch
      %55 = sbr.rel (0) target = $region29
    $region28: #{tpu_custom_call.1} parent=1 // pred_region
      %56 = dma.done [#allocation6], 2048
    $region29: #{tpu_custom_call.1} parent=1 // pred_fallthru
      _
    // Predicated region
    $region30: #{tpu_custom_call.1} parent=1 // pred_check
      _
    $region31: #{tpu_custom_call.1} parent=1 // pred_check_branch
      %58 = sbr.rel (0) target = $region33
    $region32: #{tpu_custom_call.1} parent=1 // pred_region
      %59 = dma.done [#allocation6], 2048
    $region33: #{tpu_custom_call.1} parent=1 // pred_fallthru
      _
    %v60 = vld [vmem:[#allocation2] sm:$0xff]
    %v61 = vld [vmem:[#allocation5] sm:$0xff]
    %v62 = vld [vmem:[#allocation5 + $0x8] sm:$0xff]
    %v63 = vld [vmem:[#allocation5 + $0x10] sm:$0xff]
    %v64 = vld [vmem:[#allocation5 + $0x18] sm:$0xff]
    %v65 = vld [vmem:[#allocation5 + $0x20] sm:$0xff]
    %v66 = vld [vmem:[#allocation5 + $0x28] sm:$0xff]
    %v67 = vld [vmem:[#allocation5 + $0x30] sm:$0xff]
    %v68 = vld [vmem:[#allocation5 + $0x38] sm:$0xff]
    %v69 = vld [vmem:[#allocation5 + $0x40] sm:$0xff]
    %v70 = vld [vmem:[#allocation5 + $0x48] sm:$0xff]
    %v71 = vld [vmem:[#allocation5 + $0x50] sm:$0xff]
    %v72 = vld [vmem:[#allocation5 + $0x58] sm:$0xff]
    %v73 = vld [vmem:[#allocation5 + $0x60] sm:$0xff]
    %v74 = vld [vmem:[#allocation5 + $0x68] sm:$0xff]
    %v75 = vld [vmem:[#allocation5 + $0x70] sm:$0xff]
    %v76 = vld [vmem:[#allocation5 + $0x78] sm:$0xff]
    %v77 = vld [vmem:[#allocation7] sm:$0xff]
    %v78 = vld [vmem:[#allocation7 + $0x8] sm:$0xff]
    %v79 = vld [vmem:[#allocation7 + $0x10] sm:$0xff]
    %v80 = vld [vmem:[#allocation7 + $0x18] sm:$0xff]
    %v81 = vld [vmem:[#allocation7 + $0x20] sm:$0xff]
    %v82 = vld [vmem:[#allocation7 + $0x28] sm:$0xff]
    %v83 = vld [vmem:[#allocation7 + $0x30] sm:$0xff]
    %v84 = vld [vmem:[#allocation7 + $0x38] sm:$0xff]
    %v85 = vld [vmem:[#allocation7 + $0x40] sm:$0xff]
    %v86 = vld [vmem:[#allocation7 + $0x48] sm:$0xff]
    %v87 = vld [vmem:[#allocation7 + $0x50] sm:$0xff]
    %v88 = vld [vmem:[#allocation7 + $0x58] sm:$0xff]
    %v89 = vld [vmem:[#allocation7 + $0x60] sm:$0xff]
    %v90 = vld [vmem:[#allocation7 + $0x68] sm:$0xff]
    %v91 = vld [vmem:[#allocation7 + $0x70] sm:$0xff]
    %v92 = vld [vmem:[#allocation7 + $0x78] sm:$0xff]
    %v93 = vld [vmem:[%s2] sm:$0x1]
    %v94 = vld [vmem:[%s4] sm:$0x1]
    %v95 = vmax.f32 %v60, 0.0
    %v97 = vlaneseq
    %v98 = vshrl.u32 %v97, 7
    %v99 = vsub.s32 0, %v98
    %v100 = vrot.slane %v93, %v99
    %102 = vmatprep.subr.mxu0 0.0
    %103 = vmatpush1.msra.mxu0 %v61
    %104 = vmatprep.subr.mxu0 0.0
    %105 = vmatpush1.msra.mxu0 %v62
    %106 = vmatprep.subr.mxu0 0.0
    %107 = vmatpush1.msra.mxu0 %v63
    %108 = vmatprep.subr.mxu0 0.0
    %109 = vmatpush1.msra.mxu0 %v64
    %110 = vmatprep.subr.mxu0 0.0
    %111 = vmatpush1.msra.mxu0 %v65
    %112 = vmatprep.subr.mxu0 0.0
    %113 = vmatpush1.msra.mxu0 %v66
    %114 = vmatprep.subr.mxu0 0.0
    %115 = vmatpush1.msra.mxu0 %v67
    %116 = vmatprep.subr.mxu0 0.0
    %117 = vmatpush1.msra.mxu0 %v68
    %118 = vmatprep.subr.mxu0 0.0
    %119 = vmatpush1.msra.mxu0 %v69
    %120 = vmatprep.subr.mxu0 0.0
    %121 = vmatpush1.msra.mxu0 %v70
    %122 = vmatprep.subr.mxu0 0.0
    %123 = vmatpush1.msra.mxu0 %v71
    %124 = vmatprep.subr.mxu0 0.0
    %125 = vmatpush1.msra.mxu0 %v72
    %126 = vmatprep.subr.mxu0 0.0
    %127 = vmatpush1.msra.mxu0 %v73
    %128 = vmatprep.subr.mxu0 0.0
    %129 = vmatpush1.msra.mxu0 %v74
    %130 = vmatprep.subr.mxu0 0.0
    %131 = vmatpush1.msra.mxu0 %v75
    %132 = vmatprep.subr.mxu0 0.0
    %133 = vmatpush1.msra.mxu0 %v76
    %134 = vmatprep.subr.mxu0 0.0
    %135 = vmatpush1.msra.mxu0 0.0
    %136 = vmatprep.subr.mxu0 0.0
    %137 = vmatpush1.msra.mxu0 0.0
    %138 = vmatprep.subr.mxu0 0.0
    %139 = vmatpush1.msra.mxu0 0.0
    %140 = vmatprep.subr.mxu0 0.0
    %141 = vmatpush1.msra.mxu0 0.0
    %142 = vmatprep.subr.mxu0 0.0
    %143 = vmatpush1.msra.mxu0 0.0
    %144 = vmatprep.subr.mxu0 0.0
    %145 = vmatpush1.msra.mxu0 0.0
    %146 = vmatprep.subr.mxu0 0.0
    %147 = vmatpush1.msra.mxu0 0.0
    %148 = vmatprep.subr.mxu0 0.0
    %149 = vmatpush1.msra.mxu0 0.0
    %150 = vmatprep.subr.mxu0 0.0
    %151 = vmatpush1.msra.mxu0 0.0
    %152 = vmatprep.subr.mxu0 0.0
    %153 = vmatpush1.msra.mxu0 0.0
    %154 = vmatprep.subr.mxu0 0.0
    %155 = vmatpush1.msra.mxu0 0.0
    %156 = vmatprep.subr.mxu0 0.0
    %157 = vmatpush1.msra.mxu0 0.0
    %158 = vmatprep.subr.mxu0 0.0
    %159 = vmatpush1.msra.mxu0 0.0
    %160 = vmatprep.subr.mxu0 0.0
    %161 = vmatpush1.msra.mxu0 0.0
    %162 = vmatprep.subr.mxu0 0.0
    %163 = vmatpush1.msra.mxu0 0.0
    %164 = vmatprep.subr.mxu0 0.0
    %165 = vmatpush1.msra.mxu0 0.0
    %166 = vmatprep.mubr.f32.mxu0 0.0
    %167 = vmatmul.mubr.f32.gmra.mrb[0].mxu0 %v95
    %v168 = vpop.f32.mrb[0].mxu0
    %v169 = vadd.f32 %v100, %v168
    %v170 = vpop.f32.mrb[0].mxu0
    %171 = vdwg.mxu0
    %v172 = vmax.f32 %v169, 0.0
    %v174 = vlaneseq
    %v175 = vshrl.u32 %v174, 7
    %v176 = vsub.s32 0, %v175
    %v177 = vrot.slane %v94, %v176
    %179 = vmatprep.subr.mxu0 0.0
    %180 = vmatpush1.msra.mxu0 %v77
    %181 = vmatprep.subr.mxu0 0.0
    %182 = vmatpush1.msra.mxu0 %v78
    %183 = vmatprep.subr.mxu0 0.0
    %184 = vmatpush1.msra.mxu0 %v79
    %185 = vmatprep.subr.mxu0 0.0
    %186 = vmatpush1.msra.mxu0 %v80
    %187 = vmatprep.subr.mxu0 0.0
    %188 = vmatpush1.msra.mxu0 %v81
    %189 = vmatprep.subr.mxu0 0.0
    %190 = vmatpush1.msra.mxu0 %v82
    %191 = vmatprep.subr.mxu0 0.0
    %192 = vmatpush1.msra.mxu0 %v83
    %193 = vmatprep.subr.mxu0 0.0
    %194 = vmatpush1.msra.mxu0 %v84
    %195 = vmatprep.subr.mxu0 0.0
    %196 = vmatpush1.msra.mxu0 %v85
    %197 = vmatprep.subr.mxu0 0.0
    %198 = vmatpush1.msra.mxu0 %v86
    %199 = vmatprep.subr.mxu0 0.0
    %200 = vmatpush1.msra.mxu0 %v87
    %201 = vmatprep.subr.mxu0 0.0
    %202 = vmatpush1.msra.mxu0 %v88
    %203 = vmatprep.subr.mxu0 0.0
    %204 = vmatpush1.msra.mxu0 %v89
    %205 = vmatprep.subr.mxu0 0.0
    %206 = vmatpush1.msra.mxu0 %v90
    %207 = vmatprep.subr.mxu0 0.0
    %208 = vmatpush1.msra.mxu0 %v91
    %209 = vmatprep.subr.mxu0 0.0
    %210 = vmatpush1.msra.mxu0 %v92
    %211 = vmatprep.subr.mxu0 0.0
    %212 = vmatpush1.msra.mxu0 0.0
    %213 = vmatprep.subr.mxu0 0.0
    %214 = vmatpush1.msra.mxu0 0.0
    %215 = vmatprep.subr.mxu0 0.0
    %216 = vmatpush1.msra.mxu0 0.0
    %217 = vmatprep.subr.mxu0 0.0
    %218 = vmatpush1.msra.mxu0 0.0
    %219 = vmatprep.subr.mxu0 0.0
    %220 = vmatpush1.msra.mxu0 0.0
    %221 = vmatprep.subr.mxu0 0.0
    %222 = vmatpush1.msra.mxu0 0.0
    %223 = vmatprep.subr.mxu0 0.0
    %224 = vmatpush1.msra.mxu0 0.0
    %225 = vmatprep.subr.mxu0 0.0
    %226 = vmatpush1.msra.mxu0 0.0
    %227 = vmatprep.subr.mxu0 0.0
    %228 = vmatpush1.msra.mxu0 0.0
    %229 = vmatprep.subr.mxu0 0.0
    %230 = vmatpush1.msra.mxu0 0.0
    %231 = vmatprep.subr.mxu0 0.0
    %232 = vmatpush1.msra.mxu0 0.0
    %233 = vmatprep.subr.mxu0 0.0
    %234 = vmatpush1.msra.mxu0 0.0
    %235 = vmatprep.subr.mxu0 0.0
    %236 = vmatpush1.msra.mxu0 0.0
    %237 = vmatprep.subr.mxu0 0.0
    %238 = vmatpush1.msra.mxu0 0.0
    %239 = vmatprep.subr.mxu0 0.0
    %240 = vmatpush1.msra.mxu0 0.0
    %241 = vmatprep.subr.mxu0 0.0
    %242 = vmatpush1.msra.mxu0 0.0
    %243 = vmatprep.mubr.f32.mxu0 0.0
    %244 = vmatmul.mubr.f32.gmra.mrb[0].mxu0 %v172
    %v245 = vpop.f32.mrb[0].mxu0
    %v246 = vadd.f32 %v177, %v245
    %v247 = vpop.f32.mrb[0].mxu0
    %248 = vdwg.mxu0
    %v249 = vadd.f32 %v60, %v246
    %250 = vst [vmem:[#allocation8] sm:$0xff] %v249
    // Predicated region
    $region34: #{tpu_custom_call.1} parent=1 // pred_check
      _
    $region35: #{tpu_custom_call.1} parent=1 // pred_check_branch
      %252 = sbr.rel (0) target = $region37
    $region36: #{tpu_custom_call.1} parent=1 // pred_region
      %s254 = ssub.s32 128, 128
      %255 = vsyncadd [#allocation4], %s254
      %s257 = sshll.u32 [#allocation8], 4
      %s258 = int_to_ptr.vmem [resolvable:$true] %s257
      %260 = dma.vmem_to_hbm [thread:$0]  %s258, 128, %s5, [#allocation4]
    $region37: #{tpu_custom_call.1} parent=1 // pred_fallthru
      _
    // Predicated region
    $region38: #{tpu_custom_call.1} parent=1 // pred_check
      _
    $region39: #{tpu_custom_call.1} parent=1 // pred_check_branch
      %262 = sbr.rel (0) target = $region41
    $region40: #{tpu_custom_call.1} parent=1 // pred_region
      %263 = dma.done [#allocation4], 128
    $region41: #{tpu_custom_call.1} parent=1 // pred_fallthru
      _
    %264 = vsyncpa [#allocation3], 1
    %265 = vsyncpa [#allocation6], 1
    %266 = vsyncpa [#allocation4], 1

</llo_original>
